<compile_context>
chip_gen: v5e
topology: v5e:2x2
jax: 0.10.0
libtpu: 0.0.40
codegen_flags: <defaults>
</compile_context>

<pallas_src>
import functools
import math

import jax
import jax.numpy as jnp
from jax import lax
from jax.experimental import pallas as pl
from jax.experimental.pallas import tpu as pltpu


def _att_kernel(q_ref, k_ref, wq_ref, wk_ref, bq_ref, bk_ref, box_ref, out_ref,
                *, h, d_k):
    scale = 1.0 / math.sqrt(d_k)

    q = q_ref[0]            # (nq, d_model)
    k = k_ref[0]            # (nk, d_model)

    # Head-fused linear projections: one big MXU matmul each (N = h*d_k).
    # The 1/sqrt(d_k) scale is folded into qh here (cheaper than scaling the
    # (nq, nk) attention tile per head).
    qh = (jnp.dot(q, wq_ref[...], preferred_element_type=jnp.float32)
          + bq_ref[...]) * scale                      # (nq, h*d_k)
    kh = (jnp.dot(k, wk_ref[...], preferred_element_type=jnp.float32)
          + bk_ref[...])                              # (nk, h*d_k)

    # Per-head scaled dot product + log(box) bias + row softmax.
    # Static (unrolled) loop over heads; h is small.
    for i in range(h):
        lo = i * d_k
        qi = qh[:, lo:lo + d_k]                       # (nq, d_k) static slice
        ki = kh[:, lo:lo + d_k]                       # (nk, d_k) static slice
        # Contract the last dim of both operands -> no explicit ki.T transpose.
        att = lax.dot_general(qi, ki, (((1,), (1,)), ((), ())),
                              preferred_element_type=jnp.float32)  # (nq, nk)

        w = jnp.log(jnp.maximum(box_ref[0, i], 1e-6)) + att
        w = w - jnp.max(w, axis=-1, keepdims=True)
        e = jnp.exp(w)
        # Exact divide keeps bit-level parity with torch.softmax;
        # pl.reciprocal(..., approx=True) is a free EUP alternative if ~2^-12
        # relative error on the row normalizer is acceptable downstream.
        out_ref[0, i] = (e / jnp.sum(e, axis=-1, keepdims=True)).astype(out_ref.dtype)


def att_matrix_by_scaled_dot_product_with_box(queries, keys, box, Wq, bq, Wk, bk,
                                              *, h, d_k,
                                              compute_dtype=jnp.float32):
    """Returns the (b_s, h, nq, nk) attention matrix (eval-mode, no dropout).

    Wq/Wk are in torch nn.Linear layout (h*d_k, d_model); bq/bk are (h*d_k,).
    `compute_dtype=jnp.bfloat16` halves projection DMA bytes and doubles MXU
    rate (f32 accumulation is kept); default f32 for exact parity.
    """
    b_s, nq, d_model = queries.shape
    nk = keys.shape[1]
    hdk = h * d_k
    assert Wq.shape == (hdk, d_model) and Wk.shape == (hdk, d_model)
    assert bq.shape == (hdk,) and bk.shape == (hdk,)
    assert box.shape == (b_s, h, nq, nk)

    # torch Linear: y = x @ W.T + b  ->  pre-transpose the weight once (XLA op,
    # outside the kernel) so the kernel consumes it in (d_model, h*d_k) layout.
    wq_f = Wq.T.astype(compute_dtype)                 # (d_model, h*d_k)
    wk_f = Wk.T.astype(compute_dtype)
    bq2 = bq.reshape(1, hdk).astype(jnp.float32)      # (1, h*d_k)
    bk2 = bk.reshape(1, hdk).astype(jnp.float32)
    q_in = queries.astype(compute_dtype)
    k_in = keys.astype(compute_dtype)

    kernel = functools.partial(_att_kernel, h=h, d_k=d_k)

    return pl.pallas_call(
        kernel,
        out_shape=jax.ShapeDtypeStruct((b_s, h, nq, nk), jnp.float32),
        grid_spec=pltpu.PrefetchScalarGridSpec(
            num_scalar_prefetch=0,
            grid=(b_s,),
            in_specs=[
                pl.BlockSpec((1, nq, d_model), lambda b: (b, 0, 0)),    # queries
                pl.BlockSpec((1, nk, d_model), lambda b: (b, 0, 0)),    # keys
                pl.BlockSpec((d_model, hdk), lambda b: (0, 0)),         # Wq (resident)
                pl.BlockSpec((d_model, hdk), lambda b: (0, 0)),         # Wk (resident)
                pl.BlockSpec((1, hdk), lambda b: (0, 0)),               # bq (resident)
                pl.BlockSpec((1, hdk), lambda b: (0, 0)),               # bk (resident)
                pl.BlockSpec((1, h, nq, nk), lambda b: (b, 0, 0, 0)),   # box
            ],
            out_specs=pl.BlockSpec((1, h, nq, nk), lambda b: (b, 0, 0, 0)),
        ),
        compiler_params=pltpu.CompilerParams(
            dimension_semantics=("parallel",),   # batch axis shards across v7x TCs
            vmem_limit_bytes=64 * 1024 * 1024,   # headroom for larger production tiles
        ),
    )(q_in, k_in, wq_f, wk_f, bq2, bk2, box)


def _xavier_uniform(key, fan_out, fan_in):
    # matches nn.init.xavier_uniform_ for a (fan_out, fan_in) weight
    a = math.sqrt(6.0 / (fan_in + fan_out))
    return jax.random.uniform(key, (fan_out, fan_in), jnp.float32, -a, a)


def _reference(queries, keys, box, Wq, bq, Wk, bk, *, h, d_k):
    # plain-JAX reference of the torch forward (eval mode)
    b_s, nq, _ = queries.shape
    nk = keys.shape[1]
    q = (queries @ Wq.T + bq).reshape(b_s, nq, h, d_k).transpose(0, 2, 1, 3)
    k = (keys @ Wk.T + bk).reshape(b_s, nk, h, d_k).transpose(0, 2, 3, 1)
    att = jnp.matmul(q, k) / math.sqrt(d_k)
    w = jnp.log(jnp.maximum(box, 1e-6)) + att
    return jax.nn.softmax(w, axis=-1)


if __name__ == "__main__":
    d_model, d_k, d_v, h = 32, 16, 16, 4
    b_s, nq, nk = 2, 8, 8

    key = jax.random.PRNGKey(0)
    k0, k1, k2, k3, k4 = jax.random.split(key, 5)

    # Parameters (deterministic, mimicking the module's init_weights()).
    Wq = _xavier_uniform(k0, h * d_k, d_model)   # torch fc_q.weight: (h*d_k, d_model)
    Wk = _xavier_uniform(k1, h * d_k, d_model)   # torch fc_k.weight
    bq = jnp.zeros((h * d_k,), jnp.float32)      # constant 0 bias
    bk = jnp.zeros((h * d_k,), jnp.float32)

    queries = jax.random.normal(k2, (b_s, nq, d_model), jnp.float32)
    keys = jax.random.normal(k3, (b_s, nk, d_model), jnp.float32)
    # box relation embedding matrix is non-negative in DLCT (geometric weights)
    box = jax.random.uniform(k4, (b_s, h, nq, nk), jnp.float32, 0.0, 2.0)

    out = att_matrix_by_scaled_dot_product_with_box(
        queries, keys, box, Wq, bq, Wk, bk, h=h, d_k=d_k)
    out = jax.block_until_ready(out)

    ref = _reference(queries, keys, box, Wq, bq, Wk, bk, h=h, d_k=d_k)
    assert out.shape == (b_s, h, nq, nk)
    assert jnp.allclose(out, ref, atol=1e-5, rtol=1e-5), "mismatch vs reference"

    print("KERNEL_OK")
</pallas_src>

<mosaic_0001>
module attributes {stable_mosaic.version = 11 : i64} {
  func.func @_att_kernel(%arg0: i32, %arg1: memref<1x8x32xf32, #tpu.memory_space<vmem>>, %arg2: memref<1x8x32xf32, #tpu.memory_space<vmem>>, %arg3: memref<32x64xf32, #tpu.memory_space<vmem>>, %arg4: memref<32x64xf32, #tpu.memory_space<vmem>>, %arg5: memref<1x64xf32, #tpu.memory_space<vmem>>, %arg6: memref<1x64xf32, #tpu.memory_space<vmem>>, %arg7: memref<1x4x8x8xf32, #tpu.memory_space<vmem>>, %arg8: memref<1x4x8x8xf32, #tpu.memory_space<vmem>>) attributes {dimension_semantics = [#tpu.dimension_semantics<parallel>], iteration_bounds = array<i64: 2>, scalar_prefetch = 0 : i64, scratch_operands = 0 : i64, tpu.core_type = #tpu.core_type<tc>, window_params = [{transform_indices = @transform_0, window_bounds = array<i64: 1, 8, 32>}, {transform_indices = @transform_1, window_bounds = array<i64: 1, 8, 32>}, {pipeline_mode = #tpu.pipeline_mode<synchronous>, transform_indices = @transform_2, window_bounds = array<i64: 32, 64>}, {pipeline_mode = #tpu.pipeline_mode<synchronous>, transform_indices = @transform_3, window_bounds = array<i64: 32, 64>}, {pipeline_mode = #tpu.pipeline_mode<synchronous>, transform_indices = @transform_4, window_bounds = array<i64: 1, 64>}, {pipeline_mode = #tpu.pipeline_mode<synchronous>, transform_indices = @transform_5, window_bounds = array<i64: 1, 64>}, {transform_indices = @transform_6, window_bounds = array<i64: 1, 4, 8, 8>}, {transform_indices = @transform_7, window_bounds = array<i64: 1, 4, 8, 8>}]} {
    %c0 = arith.constant 0 : index
    %c0_0 = arith.constant 0 : index
    %c0_1 = arith.constant 0 : index
    %0 = vector.load %arg1[%c0, %c0_0, %c0_1] : memref<1x8x32xf32, #tpu.memory_space<vmem>>, vector<1x8x32xf32>
    %1 = vector.shape_cast %0 : vector<1x8x32xf32> to vector<8x32xf32>
    %c0_2 = arith.constant 0 : index
    %c0_3 = arith.constant 0 : index
    %c0_4 = arith.constant 0 : index
    %2 = vector.load %arg2[%c0_2, %c0_3, %c0_4] : memref<1x8x32xf32, #tpu.memory_space<vmem>>, vector<1x8x32xf32>
    %3 = vector.shape_cast %2 : vector<1x8x32xf32> to vector<8x32xf32>
    %c0_5 = arith.constant 0 : index
    %c0_6 = arith.constant 0 : index
    %4 = vector.load %arg3[%c0_5, %c0_6] : memref<32x64xf32, #tpu.memory_space<vmem>>, vector<32x64xf32>
    %cst = arith.constant dense<0.000000e+00> : vector<8x64xf32>
    %5 = tpu.matmul %1, %4, %cst {dimension_numbers = #tpu.dot_dimension_numbers<[1], [0], [0], [1], [0, 0, 1, 1], [], []>} : vector<8x32xf32>, vector<32x64xf32>, vector<8x64xf32> -> vector<8x64xf32>
    %c0_7 = arith.constant 0 : index
    %c0_8 = arith.constant 0 : index
    %6 = vector.load %arg5[%c0_7, %c0_8] : memref<1x64xf32, #tpu.memory_space<vmem>>, vector<1x64xf32>
    %7 = vector.broadcast %6 : vector<1x64xf32> to vector<8x64xf32>
    %8 = arith.addf %5, %7 : vector<8x64xf32>
    %cst_9 = arith.constant 2.500000e-01 : f32
    %9 = vector.broadcast %cst_9 : f32 to vector<8x64xf32>
    %10 = arith.mulf %8, %9 : vector<8x64xf32>
    %c0_10 = arith.constant 0 : index
    %c0_11 = arith.constant 0 : index
    %11 = vector.load %arg4[%c0_10, %c0_11] : memref<32x64xf32, #tpu.memory_space<vmem>>, vector<32x64xf32>
    %cst_12 = arith.constant dense<0.000000e+00> : vector<8x64xf32>
    %12 = tpu.matmul %3, %11, %cst_12 {dimension_numbers = #tpu.dot_dimension_numbers<[1], [0], [0], [1], [0, 0, 1, 1], [], []>} : vector<8x32xf32>, vector<32x64xf32>, vector<8x64xf32> -> vector<8x64xf32>
    %c0_13 = arith.constant 0 : index
    %c0_14 = arith.constant 0 : index
    %13 = vector.load %arg6[%c0_13, %c0_14] : memref<1x64xf32, #tpu.memory_space<vmem>>, vector<1x64xf32>
    %14 = vector.broadcast %13 : vector<1x64xf32> to vector<8x64xf32>
    %15 = arith.addf %12, %14 : vector<8x64xf32>
    %16 = vector.extract_strided_slice %10 {offsets = [0, 0], sizes = [8, 16], strides = [1, 1]} : vector<8x64xf32> to vector<8x16xf32>
    %17 = vector.extract_strided_slice %15 {offsets = [0, 0], sizes = [8, 16], strides = [1, 1]} : vector<8x64xf32> to vector<8x16xf32>
    %cst_15 = arith.constant dense<0.000000e+00> : vector<8x8xf32>
    %18 = tpu.matmul %16, %17, %cst_15 {dimension_numbers = #tpu.dot_dimension_numbers<[1], [1], [0], [0], [0, 0, 1, 0], [], []>} : vector<8x16xf32>, vector<8x16xf32>, vector<8x8xf32> -> vector<8x8xf32>
    %c0_16 = arith.constant 0 : index
    %c0_17 = arith.constant 0 : index
    %c0_18 = arith.constant 0 : index
    %c0_19 = arith.constant 0 : index
    %19 = vector.load %arg7[%c0_16, %c0_17, %c0_18, %c0_19] : memref<1x4x8x8xf32, #tpu.memory_space<vmem>>, vector<1x1x8x8xf32>
    %20 = vector.shape_cast %19 : vector<1x1x8x8xf32> to vector<8x8xf32>
    %cst_20 = arith.constant 9.99999997E-7 : f32
    %21 = vector.broadcast %cst_20 : f32 to vector<8x8xf32>
    %22 = arith.maximumf %20, %21 : vector<8x8xf32>
    %23 = math.log %22 : vector<8x8xf32>
    %24 = arith.addf %23, %18 : vector<8x8xf32>
    %cst_21 = arith.constant dense<0xFF800000> : vector<8xf32>
    %25 = vector.multi_reduction <maximumf>, %24, %cst_21 [1] : vector<8x8xf32> to vector<8xf32>
    %26 = vector.shape_cast %25 : vector<8xf32> to vector<8x1xf32>
    %27 = vector.broadcast %26 : vector<8x1xf32> to vector<8x8xf32>
    %28 = arith.subf %24, %27 : vector<8x8xf32>
    %29 = math.exp %28 : vector<8x8xf32>
    %cst_22 = arith.constant dense<0.000000e+00> : vector<8xf32>
    %30 = vector.multi_reduction <add>, %29, %cst_22 [1] : vector<8x8xf32> to vector<8xf32>
    %31 = vector.shape_cast %30 : vector<8xf32> to vector<8x1xf32>
    %32 = vector.broadcast %31 : vector<8x1xf32> to vector<8x8xf32>
    %33 = arith.divf %29, %32 : vector<8x8xf32>
    %c0_23 = arith.constant 0 : index
    %c0_24 = arith.constant 0 : index
    %c0_25 = arith.constant 0 : index
    %c0_26 = arith.constant 0 : index
    %34 = vector.load %arg8[%c0_23, %c0_24, %c0_25, %c0_26] : memref<1x4x8x8xf32, #tpu.memory_space<vmem>>, vector<1x1x8x8xf32>
    %35 = vector.shape_cast %34 : vector<1x1x8x8xf32> to vector<8x8xf32>
    %36 = vector.shape_cast %33 : vector<8x8xf32> to vector<1x1x8x8xf32>
    tpu.vector_store %arg8[%c0_23, %c0_24, %c0_25, %c0_26], %36 {strides = array<i32>} : memref<1x4x8x8xf32, #tpu.memory_space<vmem>>, vector<1x1x8x8xf32>,
    %37 = vector.extract_strided_slice %10 {offsets = [0, 16], sizes = [8, 16], strides = [1, 1]} : vector<8x64xf32> to vector<8x16xf32>
    %38 = vector.extract_strided_slice %15 {offsets = [0, 16], sizes = [8, 16], strides = [1, 1]} : vector<8x64xf32> to vector<8x16xf32>
    %cst_27 = arith.constant dense<0.000000e+00> : vector<8x8xf32>
    %39 = tpu.matmul %37, %38, %cst_27 {dimension_numbers = #tpu.dot_dimension_numbers<[1], [1], [0], [0], [0, 0, 1, 0], [], []>} : vector<8x16xf32>, vector<8x16xf32>, vector<8x8xf32> -> vector<8x8xf32>
    %c0_28 = arith.constant 0 : index
    %c1 = arith.constant 1 : index
    %c0_29 = arith.constant 0 : index
    %c0_30 = arith.constant 0 : index
    %40 = vector.load %arg7[%c0_28, %c1, %c0_29, %c0_30] : memref<1x4x8x8xf32, #tpu.memory_space<vmem>>, vector<1x1x8x8xf32>
    %41 = vector.shape_cast %40 : vector<1x1x8x8xf32> to vector<8x8xf32>
    %cst_31 = arith.constant 9.99999997E-7 : f32
    %42 = vector.broadcast %cst_31 : f32 to vector<8x8xf32>
    %43 = arith.maximumf %41, %42 : vector<8x8xf32>
    %44 = math.log %43 : vector<8x8xf32>
    %45 = arith.addf %44, %39 : vector<8x8xf32>
    %cst_32 = arith.constant dense<0xFF800000> : vector<8xf32>
    %46 = vector.multi_reduction <maximumf>, %45, %cst_32 [1] : vector<8x8xf32> to vector<8xf32>
    %47 = vector.shape_cast %46 : vector<8xf32> to vector<8x1xf32>
    %48 = vector.broadcast %47 : vector<8x1xf32> to vector<8x8xf32>
    %49 = arith.subf %45, %48 : vector<8x8xf32>
    %50 = math.exp %49 : vector<8x8xf32>
    %cst_33 = arith.constant dense<0.000000e+00> : vector<8xf32>
    %51 = vector.multi_reduction <add>, %50, %cst_33 [1] : vector<8x8xf32> to vector<8xf32>
    %52 = vector.shape_cast %51 : vector<8xf32> to vector<8x1xf32>
    %53 = vector.broadcast %52 : vector<8x1xf32> to vector<8x8xf32>
    %54 = arith.divf %50, %53 : vector<8x8xf32>
    %c0_34 = arith.constant 0 : index
    %c1_35 = arith.constant 1 : index
    %c0_36 = arith.constant 0 : index
    %c0_37 = arith.constant 0 : index
    %55 = vector.load %arg8[%c0_34, %c1_35, %c0_36, %c0_37] : memref<1x4x8x8xf32, #tpu.memory_space<vmem>>, vector<1x1x8x8xf32>
    %56 = vector.shape_cast %55 : vector<1x1x8x8xf32> to vector<8x8xf32>
    %57 = vector.shape_cast %54 : vector<8x8xf32> to vector<1x1x8x8xf32>
    tpu.vector_store %arg8[%c0_34, %c1_35, %c0_36, %c0_37], %57 {strides = array<i32>} : memref<1x4x8x8xf32, #tpu.memory_space<vmem>>, vector<1x1x8x8xf32>,
    %58 = vector.extract_strided_slice %10 {offsets = [0, 32], sizes = [8, 16], strides = [1, 1]} : vector<8x64xf32> to vector<8x16xf32>
    %59 = vector.extract_strided_slice %15 {offsets = [0, 32], sizes = [8, 16], strides = [1, 1]} : vector<8x64xf32> to vector<8x16xf32>
    %cst_38 = arith.constant dense<0.000000e+00> : vector<8x8xf32>
    %60 = tpu.matmul %58, %59, %cst_38 {dimension_numbers = #tpu.dot_dimension_numbers<[1], [1], [0], [0], [0, 0, 1, 0], [], []>} : vector<8x16xf32>, vector<8x16xf32>, vector<8x8xf32> -> vector<8x8xf32>
    %c0_39 = arith.constant 0 : index
    %c2 = arith.constant 2 : index
    %c0_40 = arith.constant 0 : index
    %c0_41 = arith.constant 0 : index
    %61 = vector.load %arg7[%c0_39, %c2, %c0_40, %c0_41] : memref<1x4x8x8xf32, #tpu.memory_space<vmem>>, vector<1x1x8x8xf32>
    %62 = vector.shape_cast %61 : vector<1x1x8x8xf32> to vector<8x8xf32>
    %cst_42 = arith.constant 9.99999997E-7 : f32
    %63 = vector.broadcast %cst_42 : f32 to vector<8x8xf32>
    %64 = arith.maximumf %62, %63 : vector<8x8xf32>
    %65 = math.log %64 : vector<8x8xf32>
    %66 = arith.addf %65, %60 : vector<8x8xf32>
    %cst_43 = arith.constant dense<0xFF800000> : vector<8xf32>
    %67 = vector.multi_reduction <maximumf>, %66, %cst_43 [1] : vector<8x8xf32> to vector<8xf32>
    %68 = vector.shape_cast %67 : vector<8xf32> to vector<8x1xf32>
    %69 = vector.broadcast %68 : vector<8x1xf32> to vector<8x8xf32>
    %70 = arith.subf %66, %69 : vector<8x8xf32>
    %71 = math.exp %70 : vector<8x8xf32>
    %cst_44 = arith.constant dense<0.000000e+00> : vector<8xf32>
    %72 = vector.multi_reduction <add>, %71, %cst_44 [1] : vector<8x8xf32> to vector<8xf32>
    %73 = vector.shape_cast %72 : vector<8xf32> to vector<8x1xf32>
    %74 = vector.broadcast %73 : vector<8x1xf32> to vector<8x8xf32>
    %75 = arith.divf %71, %74 : vector<8x8xf32>
    %c0_45 = arith.constant 0 : index
    %c2_46 = arith.constant 2 : index
    %c0_47 = arith.constant 0 : index
    %c0_48 = arith.constant 0 : index
    %76 = vector.load %arg8[%c0_45, %c2_46, %c0_47, %c0_48] : memref<1x4x8x8xf32, #tpu.memory_space<vmem>>, vector<1x1x8x8xf32>
    %77 = vector.shape_cast %76 : vector<1x1x8x8xf32> to vector<8x8xf32>
    %78 = vector.shape_cast %75 : vector<8x8xf32> to vector<1x1x8x8xf32>
    tpu.vector_store %arg8[%c0_45, %c2_46, %c0_47, %c0_48], %78 {strides = array<i32>} : memref<1x4x8x8xf32, #tpu.memory_space<vmem>>, vector<1x1x8x8xf32>,
    %79 = vector.extract_strided_slice %10 {offsets = [0, 48], sizes = [8, 16], strides = [1, 1]} : vector<8x64xf32> to vector<8x16xf32>
    %80 = vector.extract_strided_slice %15 {offsets = [0, 48], sizes = [8, 16], strides = [1, 1]} : vector<8x64xf32> to vector<8x16xf32>
    %cst_49 = arith.constant dense<0.000000e+00> : vector<8x8xf32>
    %81 = tpu.matmul %79, %80, %cst_49 {dimension_numbers = #tpu.dot_dimension_numbers<[1], [1], [0], [0], [0, 0, 1, 0], [], []>} : vector<8x16xf32>, vector<8x16xf32>, vector<8x8xf32> -> vector<8x8xf32>
    %c0_50 = arith.constant 0 : index
    %c3 = arith.constant 3 : index
    %c0_51 = arith.constant 0 : index
    %c0_52 = arith.constant 0 : index
    %82 = vector.load %arg7[%c0_50, %c3, %c0_51, %c0_52] : memref<1x4x8x8xf32, #tpu.memory_space<vmem>>, vector<1x1x8x8xf32>
    %83 = vector.shape_cast %82 : vector<1x1x8x8xf32> to vector<8x8xf32>
    %cst_53 = arith.constant 9.99999997E-7 : f32
    %84 = vector.broadcast %cst_53 : f32 to vector<8x8xf32>
    %85 = arith.maximumf %83, %84 : vector<8x8xf32>
    %86 = math.log %85 : vector<8x8xf32>
    %87 = arith.addf %86, %81 : vector<8x8xf32>
    %cst_54 = arith.constant dense<0xFF800000> : vector<8xf32>
    %88 = vector.multi_reduction <maximumf>, %87, %cst_54 [1] : vector<8x8xf32> to vector<8xf32>
    %89 = vector.shape_cast %88 : vector<8xf32> to vector<8x1xf32>
    %90 = vector.broadcast %89 : vector<8x1xf32> to vector<8x8xf32>
    %91 = arith.subf %87, %90 : vector<8x8xf32>
    %92 = math.exp %91 : vector<8x8xf32>
    %cst_55 = arith.constant dense<0.000000e+00> : vector<8xf32>
    %93 = vector.multi_reduction <add>, %92, %cst_55 [1] : vector<8x8xf32> to vector<8xf32>
    %94 = vector.shape_cast %93 : vector<8xf32> to vector<8x1xf32>
    %95 = vector.broadcast %94 : vector<8x1xf32> to vector<8x8xf32>
    %96 = arith.divf %92, %95 : vector<8x8xf32>
    %c0_56 = arith.constant 0 : index
    %c3_57 = arith.constant 3 : index
    %c0_58 = arith.constant 0 : index
    %c0_59 = arith.constant 0 : index
    %97 = vector.load %arg8[%c0_56, %c3_57, %c0_58, %c0_59] : memref<1x4x8x8xf32, #tpu.memory_space<vmem>>, vector<1x1x8x8xf32>
    %98 = vector.shape_cast %97 : vector<1x1x8x8xf32> to vector<8x8xf32>
    %99 = vector.shape_cast %96 : vector<8x8xf32> to vector<1x1x8x8xf32>
    tpu.vector_store %arg8[%c0_56, %c3_57, %c0_58, %c0_59], %99 {strides = array<i32>} : memref<1x4x8x8xf32, #tpu.memory_space<vmem>>, vector<1x1x8x8xf32>,
    return
  }
  func.func @transform_0(%arg0: i32) -> (i32, i32, i32) {
    %c0_i32 = arith.constant 0 : i32
    %c0_i32_0 = arith.constant 0 : i32
    %c0_i32_1 = arith.constant 0 : i32
    return %arg0, %c0_i32, %c0_i32_0 : i32, i32, i32
  }
  func.func @transform_1(%arg0: i32) -> (i32, i32, i32) {
    %c0_i32 = arith.constant 0 : i32
    %c0_i32_0 = arith.constant 0 : i32
    %c0_i32_1 = arith.constant 0 : i32
    return %arg0, %c0_i32, %c0_i32_0 : i32, i32, i32
  }
  func.func @transform_2(%arg0: i32) -> (i32, i32) {
    %c0_i32 = arith.constant 0 : i32
    %c0_i32_0 = arith.constant 0 : i32
    %c0_i32_1 = arith.constant 0 : i32
    return %c0_i32, %c0_i32_0 : i32, i32
  }
  func.func @transform_3(%arg0: i32) -> (i32, i32) {
    %c0_i32 = arith.constant 0 : i32
    %c0_i32_0 = arith.constant 0 : i32
    %c0_i32_1 = arith.constant 0 : i32
    return %c0_i32, %c0_i32_0 : i32, i32
  }
  func.func @transform_4(%arg0: i32) -> (i32, i32) {
    %c0_i32 = arith.constant 0 : i32
    %c0_i32_0 = arith.constant 0 : i32
    %c0_i32_1 = arith.constant 0 : i32
    return %c0_i32, %c0_i32_0 : i32, i32
  }
  func.func @transform_5(%arg0: i32) -> (i32, i32) {
    %c0_i32 = arith.constant 0 : i32
    %c0_i32_0 = arith.constant 0 : i32
    %c0_i32_1 = arith.constant 0 : i32
    return %c0_i32, %c0_i32_0 : i32, i32
  }
  func.func @transform_6(%arg0: i32) -> (i32, i32, i32, i32) {
    %c0_i32 = arith.constant 0 : i32
    %c0_i32_0 = arith.constant 0 : i32
    %c0_i32_1 = arith.constant 0 : i32
    %c0_i32_2 = arith.constant 0 : i32
    return %arg0, %c0_i32, %c0_i32_0, %c0_i32_1 : i32, i32, i32, i32
  }
  func.func @transform_7(%arg0: i32) -> (i32, i32, i32, i32) {
    %c0_i32 = arith.constant 0 : i32
    %c0_i32_0 = arith.constant 0 : i32
    %c0_i32_1 = arith.constant 0 : i32
    %c0_i32_2 = arith.constant 0 : i32
    return %arg0, %c0_i32, %c0_i32_0, %c0_i32_1 : i32, i32, i32, i32
  }
}

</mosaic_0001>

<llo_original>
// kernel: tpu_custom_call.1
$region0: #{tpu_custom_call.1}
  #allocation0 [shape = 'u32[]', space=smem, size = 0x4, offset = 0x4, fixed_abs, tag = 'smem constant byte address 0x4 - core index']
  #allocation1 [shape = 'u32[72,128]{1,0:T(1,128)}', space=vmem, size = 0x9000, scoped, tag = 'internal scratch']
  %s0 = inlined_call_operand.hbm [shape: f32[2,8,32], index: 0, kind: input, shape index: {}]
  %s1 = inlined_call_operand.hbm [shape: f32[2,8,32], index: 1, kind: input, shape index: {}]
  %s2 = inlined_call_operand.hbm [shape: f32[32,64], index: 2, kind: input, shape index: {}]
  %s3 = inlined_call_operand.hbm [shape: f32[32,64], index: 3, kind: input, shape index: {}]
  %s4 = inlined_call_operand.vmem [shape: f32[1,64], index: 4, kind: input, shape index: {}]
  %s5 = inlined_call_operand.vmem [shape: f32[1,64], index: 5, kind: input, shape index: {}]
  %s6 = inlined_call_operand.hbm [shape: f32[2,4,8,8], index: 6, kind: input, shape index: {}]
  %s7 = inlined_call_operand.hbm [shape: f32[2,4,8,8], index: 7, kind: output, shape index: {}]
  %s8 = sld [smem:[#allocation0]]
  $region81: #{tpu_custom_call.1} parent=0
    _
  %s10 = ssub.s32 1, %s8
  %s11 = scalar_select 0, %s10, %s8
  $region1: #{tpu_custom_call.1} parent=0
    #allocation2 [shape = 'u8[8192]{0}', space=vmem, size = 0x2000, scoped, tag = 'input window, operand 0']
    #allocation3 [shape = 's32[2]{0}', space=sflag, size = 0x8, scoped, tag = 'scoped memory for tpu_custom_call.1']
    #allocation4 [shape = 's32[2]{0}', space=sflag, size = 0x8, scoped, tag = 'scoped memory for tpu_custom_call.1']
    #allocation5 [shape = 'u8[8192]{0}', space=vmem, size = 0x2000, scoped, tag = 'input window, operand 1']
    #allocation6 [shape = 's32[2]{0}', space=sflag, size = 0x8, scoped, tag = 'scoped memory for tpu_custom_call.1']
    #allocation7 [shape = 'u8[16384]{0}', space=vmem, size = 0x4000, scoped, tag = 'input window, operand 2, single buffered']
    #allocation8 [shape = 'u8[16384]{0}', space=vmem, size = 0x4000, scoped, tag = 'input window, operand 3, single buffered']
    #allocation9 [shape = 's32[1]{0}', space=sflag, size = 0x4, scoped, tag = 'scoped memory for tpu_custom_call.1']
    #allocation10 [shape = 'u8[32768]{0}', space=vmem, size = 0x8000, scoped, tag = 'input window, operand 6']
    #allocation11 [shape = 'u8[32768]{0}', space=vmem, size = 0x8000, scoped, tag = 'output window, operand 0']
    %12 = vsyncpa [#allocation3], 0
    %s13 = scalar_lea.sflag [#allocation3], 1
    %14 = vsyncpa %s13, 0
    %15 = vsyncpa [#allocation6], 0
    %s16 = scalar_lea.sflag [#allocation6], 1
    %17 = vsyncpa %s16, 0
    %18 = vsyncpa [#allocation9], 0
    %19 = vsyncpa [#allocation4], 0
    %s20 = scalar_lea.sflag [#allocation4], 1
    %21 = vsyncpa %s20, 0
    loop: start=0, step=1, limit=4
    $region2: #{tpu_custom_call.1} parent=1 // loop_pre_header
      _
    $region3: #{tpu_custom_call.1} parent=1 // loop_header
      %s23 = sphi 0, %s27
      %p24 = scmp.ge.s32.totalorder %s23, 4
      %s33 = sphi 0, %s35
      %s36 = sphi 0, %s33
      %s37 = sphi 0, %s36
      %s53 = sphi 0, %s37
      %s59 = sphi 0, %s61
      %s62 = sphi 0, %s59
      %s63 = sphi 0, %s62
      %s79 = sphi 0, %s63
      %s83 = sphi 0, %s83
      %s85 = sphi 0, %s83
      %s86 = sphi 0, %s85
      %s100 = sphi 0, %s86
      %s104 = sphi 0, %s104
      %s106 = sphi 0, %s104
      %s107 = sphi 0, %s106
      %s121 = sphi 0, %s107
      %s125 = sphi 0, %s125
      %s127 = sphi 0, %s125
      %s128 = sphi 0, %s127
      %s142 = sphi 0, %s128
      %s146 = sphi 0, %s146
      %s148 = sphi 0, %s146
      %s149 = sphi 0, %s148
      %s163 = sphi 0, %s149
      %s169 = sphi 0, %s171
      %s172 = sphi 0, %s169
      %s173 = sphi 0, %s172
      %s189 = sphi 0, %s173
      %s195 = sphi 0, %s197
      %s198 = sphi 0, %s195
      %s199 = sphi 0, %s198
      %s215 = sphi 0, %s199
    $region4: #{tpu_custom_call.1} parent=1 // loop_header_branch
      %26 = sbr.rel (%p24) target = $region8
    $region5: #{tpu_custom_call.1} parent=1 // loop_body
      %s28 = ssub.s32 %s23, 1
      %s29 = ssub.s32 %s23, 2
      %s30 = sadd.s32 %s23, 1
      %s31 = ssub.s32 %s23, %s30
      %p32 = scmp.eq.s32.totalorder %s31, 0
      %s34 = sadd.s32 %s33, 1
      %s35 = scalar_select %p32, %s33, %s34
      %p38 = pneg %p32
      %p39 = scmp.eq.s32.totalorder %s23, 1
      %p40 = por %p38, %p39
      %p41 = scmp.ne.s32.totalorder %s33, %s36
      %p42 = scmp.eq.s32.totalorder %s23, 0
      %p43 = por %p41, %p42
      %p44 = scmp.ne.s32.totalorder %s33, %s36
      %p45 = scmp.eq.s32.totalorder %s28, 1
      %p46 = por %p44, %p45
      %p47 = scmp.ne.s32.totalorder %s36, %s37
      %p48 = scmp.eq.s32.totalorder %s28, 0
      %p49 = por %p47, %p48
      %p50 = scmp.ne.s32.totalorder %s36, %s37
      %p51 = scmp.eq.s32.totalorder %s29, 1
      %p52 = por %p50, %p51
      %p54 = scmp.ne.s32.totalorder %s37, %s53
      %p55 = scmp.eq.s32.totalorder %s29, 0
      %p56 = por %p54, %p55
      %s57 = ssub.s32 %s23, %s30
      %p58 = scmp.eq.s32.totalorder %s57, 0
      %s60 = sadd.s32 %s59, 1
      %s61 = scalar_select %p58, %s59, %s60
      %p64 = pneg %p58
      %p65 = scmp.eq.s32.totalorder %s23, 1
      %p66 = por %p64, %p65
      %p67 = scmp.ne.s32.totalorder %s59, %s62
      %p68 = scmp.eq.s32.totalorder %s23, 0
      %p69 = por %p67, %p68
      %p70 = scmp.ne.s32.totalorder %s59, %s62
      %p71 = scmp.eq.s32.totalorder %s28, 1
      %p72 = por %p70, %p71
      %p73 = scmp.ne.s32.totalorder %s62, %s63
      %p74 = scmp.eq.s32.totalorder %s28, 0
      %p75 = por %p73, %p74
      %p76 = scmp.ne.s32.totalorder %s62, %s63
      %p77 = scmp.eq.s32.totalorder %s29, 1
      %p78 = por %p76, %p77
      %p80 = scmp.ne.s32.totalorder %s63, %s79
      %p81 = scmp.eq.s32.totalorder %s29, 0
      %p82 = por %p80, %p81
      %s84 = sadd.s32 %s83, 1
      %p87 = scmp.eq.s32.totalorder %s23, 1
      %p88 = scmp.ne.s32.totalorder %s83, %s85
      %p89 = scmp.eq.s32.totalorder %s23, 0
      %p90 = por %p88, %p89
      %p91 = scmp.ne.s32.totalorder %s83, %s85
      %p92 = scmp.eq.s32.totalorder %s28, 1
      %p93 = por %p91, %p92
      %p94 = scmp.ne.s32.totalorder %s85, %s86
      %p95 = scmp.eq.s32.totalorder %s28, 0
      %p96 = por %p94, %p95
      %p97 = scmp.ne.s32.totalorder %s85, %s86
      %p98 = scmp.eq.s32.totalorder %s29, 1
      %p99 = por %p97, %p98
      %p101 = scmp.ne.s32.totalorder %s86, %s100
      %p102 = scmp.eq.s32.totalorder %s29, 0
      %p103 = por %p101, %p102
      %s105 = sadd.s32 %s104, 1
      %p108 = scmp.eq.s32.totalorder %s23, 1
      %p109 = scmp.ne.s32.totalorder %s104, %s106
      %p110 = scmp.eq.s32.totalorder %s23, 0
      %p111 = por %p109, %p110
      %p112 = scmp.ne.s32.totalorder %s104, %s106
      %p113 = scmp.eq.s32.totalorder %s28, 1
      %p114 = por %p112, %p113
      %p115 = scmp.ne.s32.totalorder %s106, %s107
      %p116 = scmp.eq.s32.totalorder %s28, 0
      %p117 = por %p115, %p116
      %p118 = scmp.ne.s32.totalorder %s106, %s107
      %p119 = scmp.eq.s32.totalorder %s29, 1
      %p120 = por %p118, %p119
      %p122 = scmp.ne.s32.totalorder %s107, %s121
      %p123 = scmp.eq.s32.totalorder %s29, 0
      %p124 = por %p122, %p123
      %s126 = sadd.s32 %s125, 1
      %p129 = scmp.eq.s32.totalorder %s23, 1
      %p130 = scmp.ne.s32.totalorder %s125, %s127
      %p131 = scmp.eq.s32.totalorder %s23, 0
      %p132 = por %p130, %p131
      %p133 = scmp.ne.s32.totalorder %s125, %s127
      %p134 = scmp.eq.s32.totalorder %s28, 1
      %p135 = por %p133, %p134
      %p136 = scmp.ne.s32.totalorder %s127, %s128
      %p137 = scmp.eq.s32.totalorder %s28, 0
      %p138 = por %p136, %p137
      %p139 = scmp.ne.s32.totalorder %s127, %s128
      %p140 = scmp.eq.s32.totalorder %s29, 1
      %p141 = por %p139, %p140
      %p143 = scmp.ne.s32.totalorder %s128, %s142
      %p144 = scmp.eq.s32.totalorder %s29, 0
      %p145 = por %p143, %p144
      %s147 = sadd.s32 %s146, 1
      %p150 = scmp.eq.s32.totalorder %s23, 1
      %p151 = scmp.ne.s32.totalorder %s146, %s148
      %p152 = scmp.eq.s32.totalorder %s23, 0
      %p153 = por %p151, %p152
      %p154 = scmp.ne.s32.totalorder %s146, %s148
      %p155 = scmp.eq.s32.totalorder %s28, 1
      %p156 = por %p154, %p155
      %p157 = scmp.ne.s32.totalorder %s148, %s149
      %p158 = scmp.eq.s32.totalorder %s28, 0
      %p159 = por %p157, %p158
      %p160 = scmp.ne.s32.totalorder %s148, %s149
      %p161 = scmp.eq.s32.totalorder %s29, 1
      %p162 = por %p160, %p161
      %p164 = scmp.ne.s32.totalorder %s149, %s163
      %p165 = scmp.eq.s32.totalorder %s29, 0
      %p166 = por %p164, %p165
      %s167 = ssub.s32 %s23, %s30
      %p168 = scmp.eq.s32.totalorder %s167, 0
      %s170 = sadd.s32 %s169, 1
      %s171 = scalar_select %p168, %s169, %s170
      %p174 = pneg %p168
      %p175 = scmp.eq.s32.totalorder %s23, 1
      %p176 = por %p174, %p175
      %p177 = scmp.ne.s32.totalorder %s169, %s172
      %p178 = scmp.eq.s32.totalorder %s23, 0
      %p179 = por %p177, %p178
      %p180 = scmp.ne.s32.totalorder %s169, %s172
      %p181 = scmp.eq.s32.totalorder %s28, 1
      %p182 = por %p180, %p181
      %p183 = scmp.ne.s32.totalorder %s172, %s173
      %p184 = scmp.eq.s32.totalorder %s28, 0
      %p185 = por %p183, %p184
      %p186 = scmp.ne.s32.totalorder %s172, %s173
      %p187 = scmp.eq.s32.totalorder %s29, 1
      %p188 = por %p186, %p187
      %p190 = scmp.ne.s32.totalorder %s173, %s189
      %p191 = scmp.eq.s32.totalorder %s29, 0
      %p192 = por %p190, %p191
      %s193 = ssub.s32 %s23, %s30
      %p194 = scmp.eq.s32.totalorder %s193, 0
      %s196 = sadd.s32 %s195, 1
      %s197 = scalar_select %p194, %s195, %s196
      %p200 = pneg %p194
      %p201 = scmp.eq.s32.totalorder %s23, 1
      %p202 = por %p200, %p201
      %p203 = scmp.ne.s32.totalorder %s195, %s198
      %p204 = scmp.eq.s32.totalorder %s23, 0
      %p205 = por %p203, %p204
      %p206 = scmp.ne.s32.totalorder %s195, %s198
      %p207 = scmp.eq.s32.totalorder %s28, 1
      %p208 = por %p206, %p207
      %p209 = scmp.ne.s32.totalorder %s198, %s199
      %p210 = scmp.eq.s32.totalorder %s28, 0
      %p211 = por %p209, %p210
      %p212 = scmp.ne.s32.totalorder %s198, %s199
      %p213 = scmp.eq.s32.totalorder %s29, 1
      %p214 = por %p212, %p213
      %p216 = scmp.ne.s32.totalorder %s199, %s215
      %p217 = scmp.eq.s32.totalorder %s29, 0
      %p218 = por %p216, %p217
      %p219 = scmp.le.s32.totalorder 1, %s23
      %p220 = scmp.lt.s32.totalorder %s23, 3
      %p221 = pnand %p219, %p220
      %p222 = pneg %p221
      // Predicated region
      $region9: #{tpu_custom_call.1} parent=5 // pred_check
        _
      $region10: #{tpu_custom_call.1} parent=5 // pred_check_branch
        %224 = sbr.rel (%p221) target = $region12
      $region11: #{tpu_custom_call.1} parent=5 // pred_region
        %s225 = ssub.s32 %s23, 1
        // Predicated region
        $region13: #{tpu_custom_call.1} parent=11 // pred_check
          %p226 = pneg %p96
        $region14: #{tpu_custom_call.1} parent=11 // pred_check_branch
          %228 = sbr.rel (%p226) target = $region16
        $region15: #{tpu_custom_call.1} parent=11 // pred_region
          %230 = vsyncadd [#allocation6], 0
          %s231 = sshll.u32 %s2, 4
          %s232 = int_to_ptr.hbm [resolvable:$true] %s231
          %s233 = sshll.u32 [#allocation7], 4
          %s234 = int_to_ptr.vmem [resolvable:$true] %s233
          %239 = dma.hbm_to_vmem [thread:$0]  %s232, 512, %s234, [#allocation6], 128, 128, 8
        $region16: #{tpu_custom_call.1} parent=11 // pred_fallthru
          _
        // Predicated region
        $region17: #{tpu_custom_call.1} parent=11 // pred_check
          %p240 = pneg %p117
        $region18: #{tpu_custom_call.1} parent=11 // pred_check_branch
          %242 = sbr.rel (%p240) target = $region20
        $region19: #{tpu_custom_call.1} parent=11 // pred_region
          %244 = vsyncadd [#allocation9], 0
          %s245 = sshll.u32 %s3, 4
          %s246 = int_to_ptr.hbm [resolvable:$true] %s245
          %s247 = sshll.u32 [#allocation8], 4
          %s248 = int_to_ptr.vmem [resolvable:$true] %s247
          %253 = dma.hbm_to_vmem [thread:$0]  %s246, 512, %s248, [#allocation9], 128, 128, 8
        $region20: #{tpu_custom_call.1} parent=11 // pred_fallthru
          _
        // Predicated region
        $region21: #{tpu_custom_call.1} parent=11 // pred_check
          %p254 = pneg %p138
        $region22: #{tpu_custom_call.1} parent=11 // pred_check_branch
          %256 = sbr.rel (%p254) target = $region24
        $region23: #{tpu_custom_call.1} parent=11 // pred_region
          _
        $region24: #{tpu_custom_call.1} parent=11 // pred_fallthru
          _
        // Predicated region
        $region25: #{tpu_custom_call.1} parent=11 // pred_check
          %p257 = pneg %p159
        $region26: #{tpu_custom_call.1} parent=11 // pred_check_branch
          %259 = sbr.rel (%p257) target = $region28
        $region27: #{tpu_custom_call.1} parent=11 // pred_region
          _
        $region28: #{tpu_custom_call.1} parent=11 // pred_fallthru
          _
      $region12: #{tpu_custom_call.1} parent=5 // pred_fallthru
        _
      %p260 = scmp.lt.s32.totalorder %s23, 2
      // Predicated region
      $region29: #{tpu_custom_call.1} parent=5 // pred_check
        %p261 = pneg %p260
      $region30: #{tpu_custom_call.1} parent=5 // pred_check_branch
        %263 = sbr.rel (%p261) target = $region32
      $region31: #{tpu_custom_call.1} parent=5 // pred_region
        // Predicated region
        $region33: #{tpu_custom_call.1} parent=31 // pred_check
          %p264 = pneg %p43
        $region34: #{tpu_custom_call.1} parent=31 // pred_check_branch
          %266 = sbr.rel (%p264) target = $region36
        $region35: #{tpu_custom_call.1} parent=31 // pred_region
          %s267 = sand.u32 %s23, 1
          %s268 = scalar_lea.sflag [#allocation3], %s267
          %s269 = sand.u32 %s33, 1
          %s270 = smul.addr %s269, 8
          %s271 = scalar_lea.vmem [#allocation2], %s270
          %273 = vsyncadd %s268, 0
          %s274 = smul.addr %s23, 8
          %s275 = scalar_lea.hbm %s0, %s274
          %s277 = sshll.u32 %s275, 4
          %s278 = int_to_ptr.hbm [resolvable:$true] %s277
          %s279 = sshll.u32 %s271, 4
          %s280 = int_to_ptr.vmem [resolvable:$true] %s279
          %282 = dma.hbm_to_vmem [thread:$0]  %s278, 128, %s280, %s268
        $region36: #{tpu_custom_call.1} parent=31 // pred_fallthru
          _
        // Predicated region
        $region37: #{tpu_custom_call.1} parent=31 // pred_check
          %p283 = pneg %p69
        $region38: #{tpu_custom_call.1} parent=31 // pred_check_branch
          %285 = sbr.rel (%p283) target = $region40
        $region39: #{tpu_custom_call.1} parent=31 // pred_region
          %s286 = sand.u32 %s23, 1
          %s287 = scalar_lea.sflag [#allocation6], %s286
          %s288 = sand.u32 %s59, 1
          %s289 = smul.addr %s288, 8
          %s290 = scalar_lea.vmem [#allocation5], %s289
          %292 = vsyncadd %s287, 0
          %s293 = smul.addr %s23, 8
          %s294 = scalar_lea.hbm %s1, %s293
          %s296 = sshll.u32 %s294, 4
          %s297 = int_to_ptr.hbm [resolvable:$true] %s296
          %s298 = sshll.u32 %s290, 4
          %s299 = int_to_ptr.vmem [resolvable:$true] %s298
          %301 = dma.hbm_to_vmem [thread:$0]  %s297, 128, %s299, %s287
        $region40: #{tpu_custom_call.1} parent=31 // pred_fallthru
          _
        // Predicated region
        $region41: #{tpu_custom_call.1} parent=31 // pred_check
          %p302 = pneg %p179
        $region42: #{tpu_custom_call.1} parent=31 // pred_check_branch
          %304 = sbr.rel (%p302) target = $region44
        $region43: #{tpu_custom_call.1} parent=31 // pred_region
          %s305 = sand.u32 %s23, 1
          %s306 = scalar_lea.sflag [#allocation3], %s305
          %s307 = sand.u32 %s169, 1
          %s308 = smul.addr %s307, 32
          %s309 = scalar_lea.vmem [#allocation10], %s308
          %311 = vsyncadd %s306, 0
          %s312 = smul.addr %s23, 4
          %s313 = smul.addr %s312, 8
          %s314 = scalar_lea.hbm %s6, %s313
          %s315 = sshll.u32 %s314, 4
          %s316 = int_to_ptr.hbm [resolvable:$true] %s315
          %s317 = sshll.u32 %s309, 4
          %s318 = int_to_ptr.vmem [resolvable:$true] %s317
          %323 = dma.hbm_to_vmem [thread:$0]  %s316, 512, %s318, %s306, 128, 128, 8
        $region44: #{tpu_custom_call.1} parent=31 // pred_fallthru
          _
      $region32: #{tpu_custom_call.1} parent=5 // pred_fallthru
        _
      %p324 = scmp.le.s32.totalorder 1, %s23
      %p325 = scmp.lt.s32.totalorder %s23, 3
      %p326 = pnand %p324, %p325
      %p327 = pneg %p326
      // Predicated region
      $region45: #{tpu_custom_call.1} parent=5 // pred_check
        _
      $region46: #{tpu_custom_call.1} parent=5 // pred_check_branch
        %329 = sbr.rel (%p326) target = $region48
      $region47: #{tpu_custom_call.1} parent=5 // pred_region
        %s330 = ssub.s32 %s23, 1
        %s331 = sand.u32 %s28, 1
        %s332 = scalar_lea.sflag [#allocation3], %s331
        %s333 = sand.u32 %s36, 1
        %s334 = smul.addr %s333, 8
        %s335 = scalar_lea.vmem [#allocation2], %s334
        // Predicated region
        $region49: #{tpu_custom_call.1} parent=47 // pred_check
          %p336 = pneg %p49
        $region50: #{tpu_custom_call.1} parent=47 // pred_check_branch
          %338 = sbr.rel (%p336) target = $region52
        $region51: #{tpu_custom_call.1} parent=47 // pred_region
          %340 = dma.done %s332, 128
        $region52: #{tpu_custom_call.1} parent=47 // pred_fallthru
          _
        %s341 = sand.u32 %s28, 1
        %s342 = scalar_lea.sflag [#allocation6], %s341
        %s343 = sand.u32 %s62, 1
        %s344 = smul.addr %s343, 8
        %s345 = scalar_lea.vmem [#allocation5], %s344
        // Predicated region
        $region53: #{tpu_custom_call.1} parent=47 // pred_check
          %p346 = pneg %p75
        $region54: #{tpu_custom_call.1} parent=47 // pred_check_branch
          %348 = sbr.rel (%p346) target = $region56
        $region55: #{tpu_custom_call.1} parent=47 // pred_region
          %350 = dma.done %s342, 128
        $region56: #{tpu_custom_call.1} parent=47 // pred_fallthru
          _
        // Predicated region
        $region57: #{tpu_custom_call.1} parent=47 // pred_check
          %p351 = pneg %p96
        $region58: #{tpu_custom_call.1} parent=47 // pred_check_branch
          %353 = sbr.rel (%p351) target = $region60
        $region59: #{tpu_custom_call.1} parent=47 // pred_region
          %355 = dma.done [#allocation6], 512
        $region60: #{tpu_custom_call.1} parent=47 // pred_fallthru
          _
        // Predicated region
        $region61: #{tpu_custom_call.1} parent=47 // pred_check
          %p356 = pneg %p117
        $region62: #{tpu_custom_call.1} parent=47 // pred_check_branch
          %358 = sbr.rel (%p356) target = $region64
        $region63: #{tpu_custom_call.1} parent=47 // pred_region
          %360 = dma.done [#allocation9], 512
        $region64: #{tpu_custom_call.1} parent=47 // pred_fallthru
          _
        %s361 = sand.u32 %s28, 1
        %s362 = scalar_lea.sflag [#allocation3], %s361
        %s363 = sand.u32 %s172, 1
        %s364 = smul.addr %s363, 32
        %s365 = scalar_lea.vmem [#allocation10], %s364
        // Predicated region
        $region65: #{tpu_custom_call.1} parent=47 // pred_check
          %p366 = pneg %p185
        $region66: #{tpu_custom_call.1} parent=47 // pred_check_branch
          %368 = sbr.rel (%p366) target = $region68
        $region67: #{tpu_custom_call.1} parent=47 // pred_region
          %370 = dma.done %s362, 512
        $region68: #{tpu_custom_call.1} parent=47 // pred_fallthru
          _
        %s371 = sand.u32 %s28, 1
        %s372 = scalar_lea.sflag [#allocation3], %s371
        %s373 = sand.u32 %s36, 1
        %s374 = smul.addr %s373, 8
        %s375 = scalar_lea.vmem [#allocation2], %s374
        %p376 = pneg %p49
        %p377 = pneg %p46
        %s378 = sand.u32 %s28, 1
        %s379 = scalar_lea.sflag [#allocation6], %s378
        %s380 = sand.u32 %s62, 1
        %s381 = smul.addr %s380, 8
        %s382 = scalar_lea.vmem [#allocation5], %s381
        %p383 = pneg %p75
        %p384 = pneg %p72
        %p385 = pneg %p96
        %p386 = pneg %p93
        %p387 = pneg %p117
        %p388 = pneg %p114
        %p389 = pneg %p138
        %p390 = pneg %p135
        %p391 = pneg %p159
        %p392 = pneg %p156
        %s393 = sand.u32 %s28, 1
        %s394 = scalar_lea.sflag [#allocation3], %s393
        %s395 = sand.u32 %s172, 1
        %s396 = smul.addr %s395, 32
        %s397 = scalar_lea.vmem [#allocation10], %s396
        %p398 = pneg %p185
        %p399 = pneg %p182
        %p400 = pneg %p211
        %p401 = pneg %p208
        %s402 = sand.u32 %s198, 1
        %s403 = scalar_lea.sflag [#allocation4], %s402
        %s404 = sand.u32 %s198, 1
        %s405 = smul.addr %s404, 32
        %s406 = scalar_lea.vmem [#allocation11], %s405
        %v407 = vld [vmem:[%s335] sm:$0xff]
        %v408 = vld [vmem:[%s345] sm:$0xff]
        %v409 = vld [vmem:[#allocation7] sm:$0xff]
        %v410 = vld [vmem:[#allocation7 + $0x8] sm:$0xff]
        %v411 = vld [vmem:[#allocation7 + $0x10] sm:$0xff]
        %v412 = vld [vmem:[#allocation7 + $0x18] sm:$0xff]
        %v413 = vld [vmem:[%s4] sm:$0x1]
        %v415 = vperm.slane %v413, 0
        %vm417 = vcmask 261120
        %v419 = vsel %vm417, %v407, 0
        %421 = vmatpush.msra.mxu0 0.0
        %422 = vmatpush.msra.mxu0 0.0
        %423 = vmatpush.msra.mxu0 0.0
        %424 = vmatpush.msra.mxu0 0.0
        %425 = vmatpush.msra.mxu0 0.0
        %426 = vmatpush.msra.mxu0 0.0
        %427 = vmatpush.msra.mxu0 0.0
        %428 = vmatpush.msra.mxu0 0.0
        %429 = vmatpush.msra.mxu0 0.0
        %430 = vmatpush.msra.mxu0 0.0
        %431 = vmatpush.msra.mxu0 0.0
        %432 = vmatpush.msra.mxu0 0.0
        %433 = vmatpush.msra.mxu0 %v412
        %434 = vmatpush.msra.mxu0 %v411
        %435 = vmatpush.msra.mxu0 %v410
        %436 = vmatpush.msra.mxu0 %v409
        %437 = vmatmul.f32.gmra.mxu0 %v419
        %v438 = vpop.f32.mrf.mxu0
        %v439 = vadd.f32 %v415, %v438
        %440 = vdwg.mxu0
        %v441 = vmul.f32 %v439, 0.25
        %v442 = vld [vmem:[#allocation8] sm:$0xff]
        %v443 = vld [vmem:[#allocation8 + $0x8] sm:$0xff]
        %v444 = vld [vmem:[#allocation8 + $0x10] sm:$0xff]
        %v445 = vld [vmem:[#allocation8 + $0x18] sm:$0xff]
        %v446 = vld [vmem:[%s5] sm:$0x1]
        %v448 = vperm.slane %v446, 0
        %v451 = vsel %vm417, %v408, 0
        %453 = vmatpush.msra.mxu0 0.0
        %454 = vmatpush.msra.mxu0 0.0
        %455 = vmatpush.msra.mxu0 0.0
        %456 = vmatpush.msra.mxu0 0.0
        %457 = vmatpush.msra.mxu0 0.0
        %458 = vmatpush.msra.mxu0 0.0
        %459 = vmatpush.msra.mxu0 0.0
        %460 = vmatpush.msra.mxu0 0.0
        %461 = vmatpush.msra.mxu0 0.0
        %462 = vmatpush.msra.mxu0 0.0
        %463 = vmatpush.msra.mxu0 0.0
        %464 = vmatpush.msra.mxu0 0.0
        %465 = vmatpush.msra.mxu0 %v445
        %466 = vmatpush.msra.mxu0 %v444
        %467 = vmatpush.msra.mxu0 %v443
        %468 = vmatpush.msra.mxu0 %v442
        %469 = vmatmul.f32.gmra.mxu0 %v451
        %v470 = vpop.f32.mrf.mxu0
        %v471 = vadd.f32 %v448, %v470
        %472 = vdwg.mxu0
        %vm473 = vcmask 130048
        %v475 = vsel %vm473, %v441, 0
        %v478 = vsel %vm473, %v471, 0
        %480 = vmatpush.xpose.msra.mxu0 0.0
        %481 = vmatpush.xpose.msra.mxu0 0.0
        %482 = vmatpush.xpose.msra.mxu0 0.0
        %483 = vmatpush.xpose.msra.mxu0 0.0
        %484 = vmatpush.xpose.msra.mxu0 0.0
        %485 = vmatpush.xpose.msra.mxu0 0.0
        %486 = vmatpush.xpose.msra.mxu0 0.0
        %487 = vmatpush.xpose.msra.mxu0 0.0
        %488 = vmatpush.xpose.msra.mxu0 0.0
        %489 = vmatpush.xpose.msra.mxu0 0.0
        %490 = vmatpush.xpose.msra.mxu0 0.0
        %491 = vmatpush.xpose.msra.mxu0 0.0
        %492 = vmatpush.xpose.msra.mxu0 0.0
        %493 = vmatpush.xpose.msra.mxu0 0.0
        %494 = vmatpush.xpose.msra.mxu0 0.0
        %495 = vmatpush.xpose.msra.mxu0 %v478
        %496 = vmatmul.f32.gmra.mxu0 %v475
        %v497 = vpop.f32.mrf.mxu0
        %v498 = vadd.f32 0.0, %v497
        %499 = vdwg.mxu0
        %v500 = vld [vmem:[%s365] sm:$0xff]
        %v501 = vmax.f32 %v500, 1e-06
        %v502 = vlog2.pop %v501
        %v503 = vmul.f32 %v502, 0.6931472
        %v504 = vadd.f32 %v503, %v498
        %vm505 = vcmask 64512
        %v506 = vsel %vm505, %v504, -inf
        %507 = vmax.xlane.f32.xlu0 %v506
        %v508 = vpop.xlane.xlu0 %507
        %v509 = vsub.f32 %v504, %v508
        %v510 = vmul.f32 %v509, 1.442695
        %v511 = vpow.pop %v510
        %v512 = vsel %vm505, %v511, 0.0
        %513 = vadd.xlane.f32.xlu0 %v512
        %v514 = vpop.xlane.xlu0 %513
        %v515 = vrcp.pop %v514
        %v516 = vmul.f32 %v514, %v515
        %v517 = vsub.f32 1.0, %v516
        %v518 = vmul.f32 %v515, %v517
        %v519 = vadd.f32 %v515, %v518
        %vm520 = vweird.f32 %v514
        %vm521 = vweird.f32 %v515
        %vm522 = vmor %vm520, %vm521
        %v523 = vsel %vm522, %v515, %v519
        %v524 = vand.u32 2147483647, %v514
        %vm525 = vcmp.eq.f32.partialorder %v524, 8.507059e+37
        %v526 = vand.u32 %v514, 2147483648
        %v527 = vor.u32 1.1754944e-38, %v526
        %v528 = vsel %vm525, %v527, %v523
        %v529 = vmul.f32 %v511, %v528
        %530 = vst.msk [vmem:[%s406] sm:$0xff] %vm505, %v529
        %531 = vrot.lane.b32.xlu0 %v441, 112
        %v532 = vpop.permute.xlu0 %531
        %533 = vrot.lane.b32.xlu0 %v471, 112
        %v534 = vpop.permute.xlu0 %533
        %v535 = vsel %vm473, %v532, 0
        %v537 = vsel %vm473, %v534, 0
        %539 = vmatpush.xpose.msra.mxu0 0.0
        %540 = vmatpush.xpose.msra.mxu0 0.0
        %541 = vmatpush.xpose.msra.mxu0 0.0
        %542 = vmatpush.xpose.msra.mxu0 0.0
        %543 = vmatpush.xpose.msra.mxu0 0.0
        %544 = vmatpush.xpose.msra.mxu0 0.0
        %545 = vmatpush.xpose.msra.mxu0 0.0
        %546 = vmatpush.xpose.msra.mxu0 0.0
        %547 = vmatpush.xpose.msra.mxu0 0.0
        %548 = vmatpush.xpose.msra.mxu0 0.0
        %549 = vmatpush.xpose.msra.mxu0 0.0
        %550 = vmatpush.xpose.msra.mxu0 0.0
        %551 = vmatpush.xpose.msra.mxu0 0.0
        %552 = vmatpush.xpose.msra.mxu0 0.0
        %553 = vmatpush.xpose.msra.mxu0 0.0
        %554 = vmatpush.xpose.msra.mxu0 %v537
        %555 = vmatmul.f32.gmra.mxu0 %v535
        %v556 = vpop.f32.mrf.mxu0
        %v557 = vadd.f32 0.0, %v556
        %558 = vdwg.mxu0
        %s559 = scalar_lea.vmem %s365, 8 [#allocation10]
        %v560 = vld [vmem:[%s559] sm:$0xff]
        %v561 = vmax.f32 %v560, 1e-06
        %v562 = vlog2.pop %v561
        %v563 = vmul.f32 %v562, 0.6931472
        %v564 = vadd.f32 %v563, %v557
        %v565 = vsel %vm505, %v564, -inf
        %566 = vmax.xlane.f32.xlu0 %v565
        %v567 = vpop.xlane.xlu0 %566
        %v568 = vsub.f32 %v564, %v567
        %v569 = vmul.f32 %v568, 1.442695
        %v570 = vpow.pop %v569
        %v571 = vsel %vm505, %v570, 0.0
        %572 = vadd.xlane.f32.xlu0 %v571
        %v573 = vpop.xlane.xlu0 %572
        %v574 = vrcp.pop %v573
        %v575 = vmul.f32 %v573, %v574
        %v576 = vsub.f32 1.0, %v575
        %v577 = vmul.f32 %v574, %v576
        %v578 = vadd.f32 %v574, %v577
        %vm579 = vweird.f32 %v573
        %vm580 = vweird.f32 %v574
        %vm581 = vmor %vm579, %vm580
        %v582 = vsel %vm581, %v574, %v578
        %v583 = vand.u32 2147483647, %v573
        %vm584 = vcmp.eq.f32.partialorder %v583, 8.507059e+37
        %v585 = vand.u32 %v573, 2147483648
        %v586 = vor.u32 1.1754944e-38, %v585
        %v587 = vsel %vm584, %v586, %v582
        %v588 = vmul.f32 %v570, %v587
        %s589 = scalar_lea.vmem %s406, 8 [#allocation11]
        %590 = vst.msk [vmem:[%s589] sm:$0xff] %vm505, %v588
        %591 = vrot.lane.b32.xlu0 %v441, 96
        %v592 = vpop.permute.xlu0 %591
        %593 = vrot.lane.b32.xlu0 %v471, 96
        %v594 = vpop.permute.xlu0 %593
        %v595 = vsel %vm473, %v592, 0
        %v597 = vsel %vm473, %v594, 0
        %599 = vmatpush.xpose.msra.mxu0 0.0
        %600 = vmatpush.xpose.msra.mxu0 0.0
        %601 = vmatpush.xpose.msra.mxu0 0.0
        %602 = vmatpush.xpose.msra.mxu0 0.0
        %603 = vmatpush.xpose.msra.mxu0 0.0
        %604 = vmatpush.xpose.msra.mxu0 0.0
        %605 = vmatpush.xpose.msra.mxu0 0.0
        %606 = vmatpush.xpose.msra.mxu0 0.0
        %607 = vmatpush.xpose.msra.mxu0 0.0
        %608 = vmatpush.xpose.msra.mxu0 0.0
        %609 = vmatpush.xpose.msra.mxu0 0.0
        %610 = vmatpush.xpose.msra.mxu0 0.0
        %611 = vmatpush.xpose.msra.mxu0 0.0
        %612 = vmatpush.xpose.msra.mxu0 0.0
        %613 = vmatpush.xpose.msra.mxu0 0.0
        %614 = vmatpush.xpose.msra.mxu0 %v597
        %615 = vmatmul.f32.gmra.mxu0 %v595
        %v616 = vpop.f32.mrf.mxu0
        %v617 = vadd.f32 0.0, %v616
        %618 = vdwg.mxu0
        %s619 = scalar_lea.vmem %s365, 16 [#allocation10]
        %v620 = vld [vmem:[%s619] sm:$0xff]
        %v621 = vmax.f32 %v620, 1e-06
        %v622 = vlog2.pop %v621
        %v623 = vmul.f32 %v622, 0.6931472
        %v624 = vadd.f32 %v623, %v617
        %v625 = vsel %vm505, %v624, -inf
        %626 = vmax.xlane.f32.xlu0 %v625
        %v627 = vpop.xlane.xlu0 %626
        %v628 = vsub.f32 %v624, %v627
        %v629 = vmul.f32 %v628, 1.442695
        %v630 = vpow.pop %v629
        %v631 = vsel %vm505, %v630, 0.0
        %632 = vadd.xlane.f32.xlu0 %v631
        %v633 = vpop.xlane.xlu0 %632
        %v634 = vrcp.pop %v633
        %v635 = vmul.f32 %v633, %v634
        %v636 = vsub.f32 1.0, %v635
        %v637 = vmul.f32 %v634, %v636
        %v638 = vadd.f32 %v634, %v637
        %vm639 = vweird.f32 %v633
        %vm640 = vweird.f32 %v634
        %vm641 = vmor %vm639, %vm640
        %v642 = vsel %vm641, %v634, %v638
        %v643 = vand.u32 2147483647, %v633
        %vm644 = vcmp.eq.f32.partialorder %v643, 8.507059e+37
        %v645 = vand.u32 %v633, 2147483648
        %v646 = vor.u32 1.1754944e-38, %v645
        %v647 = vsel %vm644, %v646, %v642
        %v648 = vmul.f32 %v630, %v647
        %s649 = scalar_lea.vmem %s406, 16 [#allocation11]
        %650 = vst.msk [vmem:[%s649] sm:$0xff] %vm505, %v648
        %651 = vrot.lane.b32.xlu0 %v441, 80
        %v652 = vpop.permute.xlu0 %651
        %653 = vrot.lane.b32.xlu0 %v471, 80
        %v654 = vpop.permute.xlu0 %653
        %v655 = vsel %vm473, %v652, 0
        %v657 = vsel %vm473, %v654, 0
        %659 = vmatpush.xpose.msra.mxu0 0.0
        %660 = vmatpush.xpose.msra.mxu0 0.0
        %661 = vmatpush.xpose.msra.mxu0 0.0
        %662 = vmatpush.xpose.msra.mxu0 0.0
        %663 = vmatpush.xpose.msra.mxu0 0.0
        %664 = vmatpush.xpose.msra.mxu0 0.0
        %665 = vmatpush.xpose.msra.mxu0 0.0
        %666 = vmatpush.xpose.msra.mxu0 0.0
        %667 = vmatpush.xpose.msra.mxu0 0.0
        %668 = vmatpush.xpose.msra.mxu0 0.0
        %669 = vmatpush.xpose.msra.mxu0 0.0
        %670 = vmatpush.xpose.msra.mxu0 0.0
        %671 = vmatpush.xpose.msra.mxu0 0.0
        %672 = vmatpush.xpose.msra.mxu0 0.0
        %673 = vmatpush.xpose.msra.mxu0 0.0
        %674 = vmatpush.xpose.msra.mxu0 %v657
        %675 = vmatmul.f32.gmra.mxu0 %v655
        %v676 = vpop.f32.mrf.mxu0
        %v677 = vadd.f32 0.0, %v676
        %678 = vdwg.mxu0
        %s679 = scalar_lea.vmem %s365, 24 [#allocation10]
        %v680 = vld [vmem:[%s679] sm:$0xff]
        %v681 = vmax.f32 %v680, 1e-06
        %v682 = vlog2.pop %v681
        %v683 = vmul.f32 %v682, 0.6931472
        %v684 = vadd.f32 %v683, %v677
        %v685 = vsel %vm505, %v684, -inf
        %686 = vmax.xlane.f32.xlu0 %v685
        %v687 = vpop.xlane.xlu0 %686
        %v688 = vsub.f32 %v684, %v687
        %v689 = vmul.f32 %v688, 1.442695
        %v690 = vpow.pop %v689
        %v691 = vsel %vm505, %v690, 0.0
        %692 = vadd.xlane.f32.xlu0 %v691
        %v693 = vpop.xlane.xlu0 %692
        %v694 = vrcp.pop %v693
        %v695 = vmul.f32 %v693, %v694
        %v696 = vsub.f32 1.0, %v695
        %v697 = vmul.f32 %v694, %v696
        %v698 = vadd.f32 %v694, %v697
        %vm699 = vweird.f32 %v693
        %vm700 = vweird.f32 %v694
        %vm701 = vmor %vm699, %vm700
        %v702 = vsel %vm701, %v694, %v698
        %v703 = vand.u32 2147483647, %v693
        %vm704 = vcmp.eq.f32.partialorder %v703, 8.507059e+37
        %v705 = vand.u32 %v693, 2147483648
        %v706 = vor.u32 1.1754944e-38, %v705
        %v707 = vsel %vm704, %v706, %v702
        %v708 = vmul.f32 %v690, %v707
        %s709 = scalar_lea.vmem %s406, 24 [#allocation11]
        %710 = vst.msk [vmem:[%s709] sm:$0xff] %vm505, %v708
        %s711 = sand.u32 %s198, 1
        %s712 = scalar_lea.sflag [#allocation4], %s711
        %s713 = sand.u32 %s198, 1
        %s714 = smul.addr %s713, 32
        %s715 = scalar_lea.vmem [#allocation11], %s714
        // Predicated region
        $region69: #{tpu_custom_call.1} parent=47 // pred_check
          %p716 = pneg %p208
        $region70: #{tpu_custom_call.1} parent=47 // pred_check_branch
          %718 = sbr.rel (%p716) target = $region72
        $region71: #{tpu_custom_call.1} parent=47 // pred_region
          %720 = vsyncadd %s712, 0
          %s721 = smul.addr %s28, 4
          %s722 = smul.addr %s721, 8
          %s723 = scalar_lea.hbm %s7, %s722
          %s724 = sshll.u32 %s715, 4
          %s725 = int_to_ptr.vmem [resolvable:$true] %s724
          %s726 = sshll.u32 %s723, 4
          %s727 = int_to_ptr.hbm [resolvable:$true] %s726
          %732 = dma.vmem_to_hbm [thread:$0]  %s725, 512, %s727, %s712, 128, 128, 8
        $region72: #{tpu_custom_call.1} parent=47 // pred_fallthru
          _
      $region48: #{tpu_custom_call.1} parent=5 // pred_fallthru
        _
      %p733 = scmp.le.s32.totalorder 2, %s23
      // Predicated region
      $region73: #{tpu_custom_call.1} parent=5 // pred_check
        %p734 = pneg %p733
      $region74: #{tpu_custom_call.1} parent=5 // pred_check_branch
        %736 = sbr.rel (%p734) target = $region76
      $region75: #{tpu_custom_call.1} parent=5 // pred_region
        %s737 = ssub.s32 %s23, 2
        // Predicated region
        $region77: #{tpu_custom_call.1} parent=75 // pred_check
          %p738 = pneg %p214
        $region78: #{tpu_custom_call.1} parent=75 // pred_check_branch
          %740 = sbr.rel (%p738) target = $region80
        $region79: #{tpu_custom_call.1} parent=75 // pred_region
          %s741 = sand.u32 %s199, 1
          %s742 = scalar_lea.sflag [#allocation4], %s741
          %s743 = sand.u32 %s199, 1
          %s744 = smul.addr %s743, 32
          %s745 = scalar_lea.vmem [#allocation11], %s744
          %747 = dma.done %s742, 512
        $region80: #{tpu_custom_call.1} parent=75 // pred_fallthru
          _
      $region76: #{tpu_custom_call.1} parent=5 // pred_fallthru
        _
    $region6: #{tpu_custom_call.1} parent=1 // loop_footer
      %s27 = sadd.s32 1, %s23
    $region7: #{tpu_custom_call.1} parent=1 // loop_footer_branch
      %22 = sbr.rel target = $region3
    $region8: #{tpu_custom_call.1} parent=1 // loop_exit
      _
    %748 = vsyncpa [#allocation3], 1
    %s749 = scalar_lea.sflag [#allocation3], 1
    %750 = vsyncpa %s749, 1
    %751 = vsyncpa [#allocation6], 1
    %s752 = scalar_lea.sflag [#allocation6], 1
    %753 = vsyncpa %s752, 1
    %754 = vsyncpa [#allocation9], 1
    %755 = vsyncpa [#allocation4], 1
    %s756 = scalar_lea.sflag [#allocation4], 1
    %757 = vsyncpa %s756, 1

</llo_original>
